<compile_context>
chip_gen: v7x
topology: tpu7x:2x2x1
jax: 0.10.0
libtpu: 0.0.40
codegen_flags: <defaults>
</compile_context>

<pallas_src>
import numpy as np
import jax
import jax.numpy as jnp
from jax.experimental import pallas as pl
from jax.experimental.pallas import tpu as pltpu


_COL_CANDIDATES = (4096, 2048, 1024, 512, 256, 128)  # lane-dense last dims
_DEFAULT_TILE_BYTES = 4 * 1024 * 1024                # ~4 MiB per block


def _identity_kernel(x_ref, o_ref):
    # forward(x) = x : pure tile copy.
    o_ref[...] = x_ref[...]


def identity_forward(x, *, max_tile_bytes=_DEFAULT_TILE_BYTES):
    """Identity forward pass via a tiled, lane-dense Pallas copy kernel.

    NOTE: in production code an Identity module should just `return x`; the
    kernel here is an optimized memcpy kept only to exercise pallas_call.
    """
    orig_shape = x.shape
    total = x.size
    if total == 0:
        return x  # nothing to copy

    # --- choose a lane-dense 2D view --------------------------------------
    if x.ndim == 0:
        rows, cols = 1, 1
    else:
        cols = None
        for c in _COL_CANDIDATES:
            if total % c == 0:
                cols = c
                break
        if cols is None:
            # Fallback: keep the natural trailing dim (full-extent lane block).
            cols = orig_shape[-1]
            if cols == 0 or total % cols != 0:
                cols = total
        rows = total // cols
    x2 = x.reshape(rows, cols)

    # --- tile rows so each block is <= max_tile_bytes ----------------------
    bytes_per_row = max(1, cols * x2.dtype.itemsize)
    block_rows = min(rows, max(1, max_tile_bytes // bytes_per_row))
    if block_rows < rows:
        # Partial tiling: keep the sublane dim a multiple of 8.
        block_rows = max(8, (block_rows // 8) * 8)
    grid = (pl.cdiv(rows, block_rows),)

    out = pl.pallas_call(
        _identity_kernel,
        out_shape=jax.ShapeDtypeStruct((rows, cols), x2.dtype),
        grid=grid,
        in_specs=[pl.BlockSpec((block_rows, cols), lambda i: (i, 0))],
        out_specs=pl.BlockSpec((block_rows, cols), lambda i: (i, 0)),
        input_output_aliases={0: 0},  # write back into the (donated) input buffer
        compiler_params=pltpu.CompilerParams(
            dimension_semantics=("parallel",),  # megacore-shard rows on v7x
        ),
    )(x2)
    return out.reshape(orig_shape)


if __name__ == "__main__":
    key = jax.random.PRNGKey(0)
    k1, k2, k3 = jax.random.split(key, 3)

    # 1) Spec shape: small NCHW tensor (flattens to a lane-dense (1, 2048) view).
    x1 = jax.random.normal(k1, (2, 4, 16, 16), dtype=jnp.float32)
    x1_host = np.asarray(x1)  # host reference (input buffer may be donated)
    y1 = identity_forward(x1)
    jax.block_until_ready(y1)
    assert y1.shape == x1_host.shape and y1.dtype == x1_host.dtype
    assert np.array_equal(np.asarray(y1), x1_host)

    # 2) Odd shape exercising the non-128-divisible fallback path.
    x2 = jax.random.normal(k2, (3, 5, 7), dtype=jnp.float32)
    x2_host = np.asarray(x2)
    y2 = identity_forward(x2)
    jax.block_until_ready(y2)
    assert np.array_equal(np.asarray(y2), x2_host)

    # 3) Small shape with a reduced tile budget to exercise the multi-block,
    #    pipelined "parallel" grid path.
    x3 = jax.random.normal(k3, (64, 1024), dtype=jnp.float32)
    x3_host = np.asarray(x3)
    y3 = identity_forward(x3, max_tile_bytes=64 * 1024)
    jax.block_until_ready(y3)
    assert np.array_equal(np.asarray(y3), x3_host)

    print("KERNEL_OK")
</pallas_src>

<mosaic_0001>
module attributes {stable_mosaic.version = 11 : i64} {
  func.func @_identity_kernel(%arg0: i32, %arg1: memref<1x2048xf32, #tpu.memory_space<vmem>>, %arg2: memref<1x2048xf32, #tpu.memory_space<vmem>>) attributes {dimension_semantics = [#tpu.dimension_semantics<parallel>], iteration_bounds = array<i64: 1>, scalar_prefetch = 0 : i64, scratch_operands = 0 : i64, tpu.core_type = #tpu.core_type<tc>, window_params = [{transform_indices = @transform_0, window_bounds = array<i64: 1, 2048>}, {transform_indices = @transform_1, window_bounds = array<i64: 1, 2048>}]} {
    %c0 = arith.constant 0 : index
    %c0_0 = arith.constant 0 : index
    %0 = vector.load %arg1[%c0, %c0_0] : memref<1x2048xf32, #tpu.memory_space<vmem>>, vector<1x2048xf32>
    %c0_1 = arith.constant 0 : index
    %c0_2 = arith.constant 0 : index
    %1 = vector.load %arg2[%c0_1, %c0_2] : memref<1x2048xf32, #tpu.memory_space<vmem>>, vector<1x2048xf32>
    tpu.vector_store %arg2[%c0_1, %c0_2], %0 {strides = array<i32>} : memref<1x2048xf32, #tpu.memory_space<vmem>>, vector<1x2048xf32>,
    return
  }
  func.func @transform_0(%arg0: i32) -> (i32, i32) {
    %c0_i32 = arith.constant 0 : i32
    %c0_i32_0 = arith.constant 0 : i32
    return %arg0, %c0_i32 : i32, i32
  }
  func.func @transform_1(%arg0: i32) -> (i32, i32) {
    %c0_i32 = arith.constant 0 : i32
    %c0_i32_0 = arith.constant 0 : i32
    return %arg0, %c0_i32 : i32, i32
  }
}

</mosaic_0001>

<llo_original>
// kernel: tpu_custom_call.1
$region0: #{tpu_custom_call.1}
  #allocation0 [shape = 'u32[]', space=smem, size = 0x4, offset = 0x4, fixed_abs, tag = 'smem constant byte address 0x4 - core index']
  #allocation1 [shape = 'u32[144,128]{1,0:T(1,128)}', space=vmem, size = 0x12000, scoped, tag = 'internal scratch']
  %s0 = inlined_call_operand.hbm [shape: f32[1,2048], index: 0, kind: input, shape index: {}, may-alias: {0,1}]
  %s1 = inlined_call_operand.hbm [shape: f32[1,2048], index: 1, kind: output, shape index: {}, may-alias: {0,1}]
  %s2 = sld [smem:[#allocation0]]
  $region18: #{tpu_custom_call.1} parent=0
    _
  %s4 = ssub.s32 1, %s2
  %s5 = scalar_select 0, %s4, %s2
  $region1: #{tpu_custom_call.1} parent=0
    #allocation2 [shape = 'u8[8192]{0}', space=vmem, size = 0x2000, scoped, tag = 'input window, operand 0, single buffered']
    #allocation3 [shape = 's32[1]{0}', space=sflag, size = 0x4, scoped, tag = 'scoped memory for tpu_custom_call.1']
    #allocation4 [shape = 's32[1]{0}', space=sflag, size = 0x4, scoped, tag = 'scoped memory for tpu_custom_call.1']
    #allocation5 [shape = 'u8[8192]{0}', space=vmem, size = 0x2000, scoped, tag = 'output window, operand 0, single buffered']
    %6 = vsyncpa [#allocation3], 0
    %7 = vsyncpa [#allocation4], 0
    // Predicated region
    $region2: #{tpu_custom_call.1} parent=1 // pred_check
      _
    $region3: #{tpu_custom_call.1} parent=1 // pred_check_branch
      %9 = sbr.rel (0) target = $region5
    $region4: #{tpu_custom_call.1} parent=1 // pred_region
      %s11 = ssub.s32 256, 256
      %12 = vsyncadd [#allocation3], %s11
      %s14 = sshll.u32 [#allocation2], 4
      %s15 = int_to_ptr.vmem [resolvable:$true] %s14
      %17 = dma.hbm_to_vmem [thread:$0]  %s0, 256, %s15, [#allocation3]
    $region5: #{tpu_custom_call.1} parent=1 // pred_fallthru
      _
    // Predicated region
    $region6: #{tpu_custom_call.1} parent=1 // pred_check
      _
    $region7: #{tpu_custom_call.1} parent=1 // pred_check_branch
      %19 = sbr.rel (0) target = $region9
    $region8: #{tpu_custom_call.1} parent=1 // pred_region
      %20 = dma.done [#allocation3], 256
    $region9: #{tpu_custom_call.1} parent=1 // pred_fallthru
      _
    %v21 = vld [vmem:[#allocation2] sm:$0xff]
    %v22 = vld [vmem:[#allocation2 + $0x8] sm:$0xff]
    %23 = vst [vmem:[#allocation5] sm:$0xff] %v21
    %24 = vst [vmem:[#allocation5 + $0x8] sm:$0xff] %v22
    // Predicated region
    $region10: #{tpu_custom_call.1} parent=1 // pred_check
      _
    $region11: #{tpu_custom_call.1} parent=1 // pred_check_branch
      %26 = sbr.rel (0) target = $region13
    $region12: #{tpu_custom_call.1} parent=1 // pred_region
      %s28 = ssub.s32 256, 256
      %29 = vsyncadd [#allocation4], %s28
      %s31 = sshll.u32 [#allocation5], 4
      %s32 = int_to_ptr.vmem [resolvable:$true] %s31
      %34 = dma.vmem_to_hbm [thread:$0]  %s32, 256, %s1, [#allocation4]
    $region13: #{tpu_custom_call.1} parent=1 // pred_fallthru
      _
    // Predicated region
    $region14: #{tpu_custom_call.1} parent=1 // pred_check
      _
    $region15: #{tpu_custom_call.1} parent=1 // pred_check_branch
      %36 = sbr.rel (0) target = $region17
    $region16: #{tpu_custom_call.1} parent=1 // pred_region
      %37 = dma.done [#allocation4], 256
    $region17: #{tpu_custom_call.1} parent=1 // pred_fallthru
      _
    %38 = vsyncpa [#allocation3], 1
    %39 = vsyncpa [#allocation4], 1

</llo_original>
